<compile_context>
chip_gen: v7x
topology: tpu7x:2x2x1
jax: 0.10.0
libtpu: 0.0.40
codegen_flags: <defaults>
</compile_context>

<pallas_src>
import functools

import jax
import jax.numpy as jnp
from jax.experimental import pallas as pl
from jax.experimental.pallas import tpu as pltpu


def _round_up(a: int, m: int) -> int:
    return ((a + m - 1) // m) * m


# ---------------------------------------------------------------------------
# Resident-slab kernel: whole (C, N) slab in VMEM, one grid step per batch.
# ---------------------------------------------------------------------------
def _ca_resident_kernel(gamma_ref, x_ref, o_ref, *, n, chunk, cast_bf16):
    x = x_ref[0]                                              # (C, N), native dtype
    xm = x.astype(jnp.bfloat16) if cast_bf16 else x
    # energy = X @ X^T, contracting N on both operands (no transpose copy).
    energy = jax.lax.dot_general(
        xm, xm, dimension_numbers=(((1,), (1,)), ((), ())),
        preferred_element_type=jnp.float32)                   # (C, C) f32
    # softmax(max(E) - E) row-wise  ==  exp(min(E) - E) / sum(exp(min(E) - E))
    # (same stable shift jax.nn.softmax would apply).  Exact divide: (C, C) is tiny.
    p = jnp.exp(jnp.min(energy, axis=-1, keepdims=True) - energy)
    attn = p / jnp.sum(p, axis=-1, keepdims=True)
    attn_mm = attn.astype(jnp.bfloat16 if cast_bf16 else x.dtype)
    gamma = gamma_ref[...]                                    # (1, 1) f32

    if n <= chunk:
        # Small N: single shot (temporaries are tiny).
        out = jnp.dot(attn_mm, xm, preferred_element_type=jnp.float32)
        o_ref[0] = (gamma * out + x.astype(jnp.float32)).astype(o_ref.dtype)
        return

    # Chunk the second matmul + residual epilogue over N so the only f32
    # temporaries are (C, chunk)-sized (keeps the single-read path viable on
    # v7x's 64 MiB VMEM and cuts spill pressure everywhere).
    n_full = n // chunk

    def _body(i, carry):
        start = i * chunk
        xc = x_ref[0, :, pl.ds(start, chunk)]                 # re-read per chunk
        xc_mm = xc.astype(jnp.bfloat16) if cast_bf16 else xc
        oc = jnp.dot(attn_mm, xc_mm, preferred_element_type=jnp.float32)
        o_ref[0, :, pl.ds(start, chunk)] = (
            gamma * oc + xc.astype(jnp.float32)).astype(o_ref.dtype)
        return carry

    jax.lax.fori_loop(0, n_full, _body, 0)

    tail = n - n_full * chunk
    if tail > 0:  # static tail chunk (masked store)
        start = n_full * chunk
        xc = x_ref[0, :, pl.ds(start, tail)]
        xc_mm = xc.astype(jnp.bfloat16) if cast_bf16 else xc
        oc = jnp.dot(attn_mm, xc_mm, preferred_element_type=jnp.float32)
        o_ref[0, :, pl.ds(start, tail)] = (
            gamma * oc + xc.astype(jnp.float32)).astype(o_ref.dtype)


# ---------------------------------------------------------------------------
# Two-pass tiled path (used when the (C, N) slab doesn't fit VMEM, e.g. v7x).
# ---------------------------------------------------------------------------
def _ca_energy_kernel(x_ref, attn_ref, energy_acc, *, cast_bf16):
    k = pl.program_id(1)

    @pl.when(k == 0)
    def _():
        energy_acc[...] = jnp.zeros_like(energy_acc)

    x = x_ref[0]                                              # (C, n_tile)
    xm = x.astype(jnp.bfloat16) if cast_bf16 else x
    energy_acc[...] += jax.lax.dot_general(
        xm, xm, dimension_numbers=(((1,), (1,)), ((), ())),
        preferred_element_type=jnp.float32)

    @pl.when(k == pl.num_programs(1) - 1)
    def _():
        e = energy_acc[...]
        p = jnp.exp(jnp.min(e, axis=-1, keepdims=True) - e)
        attn_ref[0] = (p / jnp.sum(p, axis=-1, keepdims=True)).astype(attn_ref.dtype)


def _ca_apply_kernel(gamma_ref, attn_ref, x_ref, o_ref, *, mm_dtype):
    x = x_ref[0]                                              # (C, n_tile)
    attn = attn_ref[0].astype(mm_dtype)                       # (C, C), f32 in HBM
    out = jnp.dot(attn, x.astype(mm_dtype), preferred_element_type=jnp.float32)
    o_ref[0] = (gamma_ref[...] * out + x.astype(jnp.float32)).astype(o_ref.dtype)


# ---------------------------------------------------------------------------
# Wrapper
# ---------------------------------------------------------------------------
def _vmem_capacity_bytes() -> int:
    try:
        cap = getattr(pltpu.get_tpu_info(), "vmem_capacity_bytes", None)
        if cap:
            return int(cap)
    except Exception:
        pass
    try:
        kind = jax.devices()[0].device_kind.lower()
    except Exception:
        kind = ""
    if "v7" in kind or "7x" in kind:
        return 64 * 1024 * 1024           # v7x: 64 MiB per TensorCore
    return 128 * 1024 * 1024              # v5e / v5p / v6e: 128 MiB


def channel_attention(x, gamma, *, force_tiled=False, n_tile=None):
    """x: (B, C, H, W); gamma: (1,) parameter. Returns (B, C, H, W)."""
    B, C, H, W = x.shape
    N = H * W
    isz = jnp.dtype(x.dtype).itemsize
    x_flat = x.reshape(B, C, N)
    gamma2 = jnp.asarray(gamma, jnp.float32).reshape(1, 1)

    # v6e/v7x MXU bf16 throughput is ~4x f32; only worth it when the C^2*N
    # matmuls dominate (large C).  Small-C cases are HBM-bound.
    cast_bf16 = (x.dtype == jnp.float32) and (C >= 256)
    mm_dtype = jnp.bfloat16 if cast_bf16 else x.dtype

    vmem_cap = _vmem_capacity_bytes()
    vmem_limit = int(0.75 * vmem_cap)     # leave headroom for Mosaic internal scratch

    chunk = 512                           # lane-dense epilogue chunk
    slab = C * N * isz                    # one native-dtype (C, N) slab
    ccf32 = C * C * 4
    # f32 (C,C) temporaries + per-chunk epilogue temporaries + small margin.
    temporaries = 4 * ccf32 + 3 * C * min(N, chunk) * 4 + (2 << 20)
    resident_db = 4 * slab + slab + temporaries     # 2x-buffered in+out slabs (+x copy margin)
    resident_sb = 2 * slab + slab + temporaries     # single-buffered slabs (B == 1 only)

    use_resident = (not force_tiled) and resident_db <= vmem_limit
    single_buffer = False
    if (not use_resident) and (not force_tiled) and B == 1 and resident_sb <= vmem_limit:
        # With B == 1 there is no next block to prefetch, so single-buffering the
        # (1, C, N) slabs is free and keeps the single-HBM-read path viable.
        use_resident, single_buffer = True, True

    if use_resident:
        spec_kw = dict(pipeline_mode=pl.Buffered(1)) if single_buffer else {}
        kern = functools.partial(_ca_resident_kernel, n=N, chunk=chunk,
                                 cast_bf16=cast_bf16)
        out_flat = pl.pallas_call(
            kern,
            out_shape=jax.ShapeDtypeStruct((B, C, N), x.dtype),
            grid_spec=pltpu.PrefetchScalarGridSpec(
                num_scalar_prefetch=0,
                grid=(B,),
                in_specs=[
                    pl.BlockSpec((1, 1), lambda b: (0, 0)),                    # gamma
                    pl.BlockSpec((1, C, N), lambda b: (b, 0, 0), **spec_kw),   # x
                ],
                out_specs=pl.BlockSpec((1, C, N), lambda b: (b, 0, 0), **spec_kw),
            ),
            compiler_params=pltpu.CompilerParams(
                dimension_semantics=("parallel",),
                vmem_limit_bytes=vmem_limit),
            cost_estimate=pl.CostEstimate(
                flops=4 * B * C * C * N,
                transcendentals=B * C * C,
                bytes_accessed=2 * B * C * N * isz + 4),
        )(gamma2, x_flat)
        return out_flat.reshape(B, C, H, W)

    # ---------------- two-pass, N-tiled fallback ----------------
    if n_tile is None:
        # Budget-driven tile size: largest multiple of 512 whose per-step
        # footprint (2x-buffered in + out blocks + f32 temporaries) fits.
        budget = max(vmem_limit - 2 * ccf32 - (4 << 20), 1 << 20)
        per_lane = C * (4 * isz + 8)
        cand = int(budget // per_lane)
        if cand >= 512:
            n_tile = min((cand // 512) * 512, 4096)
        else:
            n_tile = max((cand // 128) * 128, 128)
        n_tile = min(n_tile, _round_up(N, 128))
    n_tile = max(128, (int(n_tile) // 128) * 128)

    # Zero-pad N to a multiple of n_tile: zero columns contribute nothing to the
    # Gram matrix and produce a zero tail that is sliced off below.
    N_pad = _round_up(N, n_tile)
    if N_pad != N:
        x_flat = jnp.pad(x_flat, ((0, 0), (0, 0), (0, N_pad - N)))
    kt = N_pad // n_tile

    # Pass 1: accumulate energy over N tiles, emit attention (B, C, C) in f32.
    attn = pl.pallas_call(
        functools.partial(_ca_energy_kernel, cast_bf16=cast_bf16),
        out_shape=jax.ShapeDtypeStruct((B, C, C), jnp.float32),
        grid_spec=pltpu.PrefetchScalarGridSpec(
            num_scalar_prefetch=0,
            grid=(B, kt),
            in_specs=[pl.BlockSpec((1, C, n_tile), lambda b, k: (b, 0, k))],
            out_specs=pl.BlockSpec((1, C, C), lambda b, k: (b, 0, 0)),
            scratch_shapes=[pltpu.VMEM((C, C), jnp.float32)],
        ),
        compiler_params=pltpu.CompilerParams(
            dimension_semantics=("parallel", "arbitrary"),
            vmem_limit_bytes=vmem_limit),
        cost_estimate=pl.CostEstimate(
            flops=2 * B * C * C * N_pad,
            transcendentals=B * C * C,
            bytes_accessed=B * C * N_pad * isz + B * C * C * 4),
    )(x_flat)

    # Pass 2: out tile = gamma * (attn @ X tile) + X tile; fully parallel grid.
    out_flat = pl.pallas_call(
        functools.partial(_ca_apply_kernel, mm_dtype=mm_dtype),
        out_shape=jax.ShapeDtypeStruct((B, C, N_pad), x.dtype),
        grid_spec=pltpu.PrefetchScalarGridSpec(
            num_scalar_prefetch=0,
            grid=(B, kt),
            in_specs=[
                pl.BlockSpec((1, 1), lambda b, j: (0, 0)),                # gamma
                pl.BlockSpec((1, C, C), lambda b, j: (b, 0, 0)),          # attn (resident)
                pl.BlockSpec((1, C, n_tile), lambda b, j: (b, 0, j)),     # x
            ],
            out_specs=pl.BlockSpec((1, C, n_tile), lambda b, j: (b, 0, j)),
        ),
        compiler_params=pltpu.CompilerParams(
            dimension_semantics=("parallel", "parallel"),
            vmem_limit_bytes=vmem_limit),
        cost_estimate=pl.CostEstimate(
            flops=2 * B * C * C * N_pad,
            transcendentals=0,
            bytes_accessed=2 * B * C * N_pad * isz + B * C * C * 4),
    )(gamma2, attn, x_flat)

    return out_flat[:, :, :N].reshape(B, C, H, W)


# ---------------------------------------------------------------------------
# Pure-JAX reference (mirrors the PyTorch module)
# ---------------------------------------------------------------------------
def _reference(x, gamma):
    B, C, H, W = x.shape
    xf = x.reshape(B, C, H * W).astype(jnp.float32)
    energy = jnp.einsum("bcn,bdn->bcd", xf, xf)
    energy_new = jnp.max(energy, axis=-1, keepdims=True) - energy
    attn = jax.nn.softmax(energy_new, axis=-1)
    out = jnp.einsum("bcd,bdn->bcn", attn, xf).reshape(B, C, H, W)
    return (jnp.asarray(gamma, jnp.float32).reshape(())[()] * out
            + x.astype(jnp.float32)).astype(x.dtype)


if __name__ == "__main__":
    key = jax.random.PRNGKey(0)
    B, C, H, W = 2, 4, 16, 16
    x = jax.random.normal(key, (B, C, H, W), dtype=jnp.float32)

    # Parameter init matches nn.Parameter(torch.zeros(1)); use a nonzero value
    # so the attention path is exercised numerically.
    gamma_init = jnp.zeros((1,), dtype=jnp.float32)
    gamma_test = jnp.array([0.5], dtype=jnp.float32)

    # 1) Resident-slab path (single-shot epilogue at this N).
    ref = _reference(x, gamma_test)
    out = channel_attention(x, gamma_test)
    jax.block_until_ready(out)
    assert out.shape == (B, C, H, W)
    assert jnp.allclose(out, ref, atol=1e-3, rtol=1e-3), "resident path mismatch"

    # 2) Forced two-pass tiled path with N = 15*15 = 225 (not a multiple of 128):
    #    exercises zero-padding and multi-tile energy accumulation.
    x2 = jax.random.normal(jax.random.PRNGKey(1), (2, 4, 15, 15), dtype=jnp.float32)
    ref2 = _reference(x2, gamma_test)
    out2 = channel_attention(x2, gamma_test, force_tiled=True, n_tile=128)
    jax.block_until_ready(out2)
    assert jnp.allclose(out2, ref2, atol=1e-3, rtol=1e-3), "tiled path mismatch"

    # 3) Resident path with chunked epilogue (N = 33*33 = 1089 > 512 chunk,
    #    including a 65-wide masked tail) and B == 1.
    x3 = jax.random.normal(jax.random.PRNGKey(2), (1, 8, 33, 33), dtype=jnp.float32)
    ref3 = _reference(x3, gamma_test)
    out3 = channel_attention(x3, gamma_test)
    jax.block_until_ready(out3)
    assert jnp.allclose(out3, ref3, atol=1e-3, rtol=1e-3), "chunked resident path mismatch"

    # 4) gamma = 0 (default init) must return the input exactly (residual only).
    out0 = channel_attention(x, gamma_init)
    jax.block_until_ready(out0)
    assert jnp.allclose(out0, x, atol=1e-5), "gamma=0 should return input"

    print("KERNEL_OK")
</pallas_src>

<mosaic_0001>
module attributes {stable_mosaic.version = 11 : i64} {
  func.func @_ca_resident_kernel(%arg0: i32, %arg1: memref<1x1xf32, #tpu.memory_space<vmem>>, %arg2: memref<1x4x256xf32, #tpu.memory_space<vmem>>, %arg3: memref<1x4x256xf32, #tpu.memory_space<vmem>>) attributes {dimension_semantics = [#tpu.dimension_semantics<parallel>], iteration_bounds = array<i64: 2>, scalar_prefetch = 0 : i64, scratch_operands = 0 : i64, tpu.core_type = #tpu.core_type<tc>, window_params = [{pipeline_mode = #tpu.pipeline_mode<synchronous>, transform_indices = @transform_0, window_bounds = array<i64: 1, 1>}, {transform_indices = @transform_1, window_bounds = array<i64: 1, 4, 256>}, {transform_indices = @transform_2, window_bounds = array<i64: 1, 4, 256>}]} {
    %c0 = arith.constant 0 : index
    %c0_0 = arith.constant 0 : index
    %c0_1 = arith.constant 0 : index
    %0 = vector.load %arg2[%c0, %c0_0, %c0_1] : memref<1x4x256xf32, #tpu.memory_space<vmem>>, vector<1x4x256xf32>
    %1 = vector.shape_cast %0 : vector<1x4x256xf32> to vector<4x256xf32>
    %cst = arith.constant dense<0.000000e+00> : vector<4x4xf32>
    %2 = tpu.matmul %1, %1, %cst {dimension_numbers = #tpu.dot_dimension_numbers<[1], [1], [0], [0], [0, 0, 1, 0], [], []>} : vector<4x256xf32>, vector<4x256xf32>, vector<4x4xf32> -> vector<4x4xf32>
    %cst_2 = arith.constant dense<0x7F800000> : vector<4xf32>
    %3 = vector.multi_reduction <minimumf>, %2, %cst_2 [1] : vector<4x4xf32> to vector<4xf32>
    %4 = vector.shape_cast %3 : vector<4xf32> to vector<4x1xf32>
    %5 = vector.broadcast %4 : vector<4x1xf32> to vector<4x4xf32>
    %6 = arith.subf %5, %2 : vector<4x4xf32>
    %7 = math.exp %6 : vector<4x4xf32>
    %cst_3 = arith.constant dense<0.000000e+00> : vector<4xf32>
    %8 = vector.multi_reduction <add>, %7, %cst_3 [1] : vector<4x4xf32> to vector<4xf32>
    %9 = vector.shape_cast %8 : vector<4xf32> to vector<4x1xf32>
    %10 = vector.broadcast %9 : vector<4x1xf32> to vector<4x4xf32>
    %11 = arith.divf %7, %10 : vector<4x4xf32>
    %c0_4 = arith.constant 0 : index
    %c0_5 = arith.constant 0 : index
    %12 = vector.load %arg1[%c0_4, %c0_5] : memref<1x1xf32, #tpu.memory_space<vmem>>, vector<1x1xf32>
    %cst_6 = arith.constant dense<0.000000e+00> : vector<4x256xf32>
    %13 = tpu.matmul %11, %1, %cst_6 {dimension_numbers = #tpu.dot_dimension_numbers<[1], [0], [0], [1], [0, 0, 1, 1], [], []>} : vector<4x4xf32>, vector<4x256xf32>, vector<4x256xf32> -> vector<4x256xf32>
    %14 = vector.broadcast %12 : vector<1x1xf32> to vector<4x256xf32>
    %15 = arith.mulf %14, %13 : vector<4x256xf32>
    %16 = arith.addf %15, %1 : vector<4x256xf32>
    %c0_7 = arith.constant 0 : index
    %c0_8 = arith.constant 0 : index
    %c0_9 = arith.constant 0 : index
    %17 = vector.load %arg3[%c0_7, %c0_8, %c0_9] : memref<1x4x256xf32, #tpu.memory_space<vmem>>, vector<1x4x256xf32>
    %18 = vector.shape_cast %17 : vector<1x4x256xf32> to vector<4x256xf32>
    %19 = vector.shape_cast %16 : vector<4x256xf32> to vector<1x4x256xf32>
    tpu.vector_store %arg3[%c0_7, %c0_8, %c0_9], %19 {strides = array<i32>} : memref<1x4x256xf32, #tpu.memory_space<vmem>>, vector<1x4x256xf32>,
    return
  }
  func.func @transform_0(%arg0: i32) -> (i32, i32) {
    %c0_i32 = arith.constant 0 : i32
    %c0_i32_0 = arith.constant 0 : i32
    %c0_i32_1 = arith.constant 0 : i32
    return %c0_i32, %c0_i32_0 : i32, i32
  }
  func.func @transform_1(%arg0: i32) -> (i32, i32, i32) {
    %c0_i32 = arith.constant 0 : i32
    %c0_i32_0 = arith.constant 0 : i32
    %c0_i32_1 = arith.constant 0 : i32
    return %arg0, %c0_i32, %c0_i32_0 : i32, i32, i32
  }
  func.func @transform_2(%arg0: i32) -> (i32, i32, i32) {
    %c0_i32 = arith.constant 0 : i32
    %c0_i32_0 = arith.constant 0 : i32
    %c0_i32_1 = arith.constant 0 : i32
    return %arg0, %c0_i32, %c0_i32_0 : i32, i32, i32
  }
}

</mosaic_0001>

<llo_original>
// kernel: tpu_custom_call.1
$region0: #{tpu_custom_call.1}
  #allocation0 [shape = 'u32[]', space=smem, size = 0x4, offset = 0x4, fixed_abs, tag = 'smem constant byte address 0x4 - core index']
  #allocation1 [shape = 'u32[144,128]{1,0:T(1,128)}', space=vmem, size = 0x12000, scoped, tag = 'internal scratch']
  #allocation2 [shape = 'f32[1,1]{1,0:T(1,128)S(1)}', space=vmem, size = 0x200, scoped, tag = 'scoped memory for tpu_custom_call.1']
  %s0 = inlined_call_operand.<no memory space> [shape: f32[1,1], index: 0, kind: input, shape index: {}]
  %s1 = inlined_call_operand.hbm [shape: f32[2,4,256], index: 1, kind: input, shape index: {}]
  %s2 = inlined_call_operand.hbm [shape: f32[2,4,256], index: 2, kind: output, shape index: {}]
  %s3 = sld [smem:[#allocation0]]
  $region45: #{tpu_custom_call.1} parent=0
    _
  %s5 = ssub.s32 1, %s3
  %s6 = scalar_select 0, %s5, %s3
  %v7 = vstv %s0
  %8 = vst [vmem:[#allocation2] sm:$0x1] %v7
  $region1: #{tpu_custom_call.1} parent=0
    #allocation3 [shape = 'u8[8192]{0}', space=vmem, size = 0x2000, scoped, tag = 'input window, operand 1']
    #allocation4 [shape = 's32[2]{0}', space=sflag, size = 0x8, scoped, tag = 'scoped memory for tpu_custom_call.1']
    #allocation5 [shape = 's32[2]{0}', space=sflag, size = 0x8, scoped, tag = 'scoped memory for tpu_custom_call.1']
    #allocation6 [shape = 'u8[8192]{0}', space=vmem, size = 0x2000, scoped, tag = 'output window, operand 0']
    %9 = vsyncpa [#allocation4], 0
    %s10 = scalar_lea.sflag [#allocation4], 1
    %11 = vsyncpa %s10, 0
    %12 = vsyncpa [#allocation5], 0
    %s13 = scalar_lea.sflag [#allocation5], 1
    %14 = vsyncpa %s13, 0
    loop: start=0, step=1, limit=4
    $region2: #{tpu_custom_call.1} parent=1 // loop_pre_header
      _
    $region3: #{tpu_custom_call.1} parent=1 // loop_header
      %s16 = sphi 0, %s20
      %p17 = scmp.ge.s32.totalorder %s16, 4
      %s24 = sphi 0, %s24
      %s26 = sphi 0, %s24
      %s27 = sphi 0, %s26
      %s41 = sphi 0, %s27
      %s47 = sphi 0, %s49
      %s50 = sphi 0, %s47
      %s51 = sphi 0, %s50
      %s67 = sphi 0, %s51
      %s73 = sphi 0, %s75
      %s76 = sphi 0, %s73
      %s77 = sphi 0, %s76
      %s93 = sphi 0, %s77
    $region4: #{tpu_custom_call.1} parent=1 // loop_header_branch
      %19 = sbr.rel (%p17) target = $region8
    $region5: #{tpu_custom_call.1} parent=1 // loop_body
      %s21 = ssub.s32 %s16, 1
      %s22 = ssub.s32 %s16, 2
      %s23 = sadd.s32 %s16, 1
      %s25 = sadd.s32 %s24, 1
      %p28 = scmp.eq.s32.totalorder %s16, 1
      %p29 = scmp.ne.s32.totalorder %s24, %s26
      %p30 = scmp.eq.s32.totalorder %s16, 0
      %p31 = por %p29, %p30
      %p32 = scmp.ne.s32.totalorder %s24, %s26
      %p33 = scmp.eq.s32.totalorder %s21, 1
      %p34 = por %p32, %p33
      %p35 = scmp.ne.s32.totalorder %s26, %s27
      %p36 = scmp.eq.s32.totalorder %s21, 0
      %p37 = por %p35, %p36
      %p38 = scmp.ne.s32.totalorder %s26, %s27
      %p39 = scmp.eq.s32.totalorder %s22, 1
      %p40 = por %p38, %p39
      %p42 = scmp.ne.s32.totalorder %s27, %s41
      %p43 = scmp.eq.s32.totalorder %s22, 0
      %p44 = por %p42, %p43
      %s45 = ssub.s32 %s16, %s23
      %p46 = scmp.eq.s32.totalorder %s45, 0
      %s48 = sadd.s32 %s47, 1
      %s49 = scalar_select %p46, %s47, %s48
      %p52 = pneg %p46
      %p53 = scmp.eq.s32.totalorder %s16, 1
      %p54 = por %p52, %p53
      %p55 = scmp.ne.s32.totalorder %s47, %s50
      %p56 = scmp.eq.s32.totalorder %s16, 0
      %p57 = por %p55, %p56
      %p58 = scmp.ne.s32.totalorder %s47, %s50
      %p59 = scmp.eq.s32.totalorder %s21, 1
      %p60 = por %p58, %p59
      %p61 = scmp.ne.s32.totalorder %s50, %s51
      %p62 = scmp.eq.s32.totalorder %s21, 0
      %p63 = por %p61, %p62
      %p64 = scmp.ne.s32.totalorder %s50, %s51
      %p65 = scmp.eq.s32.totalorder %s22, 1
      %p66 = por %p64, %p65
      %p68 = scmp.ne.s32.totalorder %s51, %s67
      %p69 = scmp.eq.s32.totalorder %s22, 0
      %p70 = por %p68, %p69
      %s71 = ssub.s32 %s16, %s23
      %p72 = scmp.eq.s32.totalorder %s71, 0
      %s74 = sadd.s32 %s73, 1
      %s75 = scalar_select %p72, %s73, %s74
      %p78 = pneg %p72
      %p79 = scmp.eq.s32.totalorder %s16, 1
      %p80 = por %p78, %p79
      %p81 = scmp.ne.s32.totalorder %s73, %s76
      %p82 = scmp.eq.s32.totalorder %s16, 0
      %p83 = por %p81, %p82
      %p84 = scmp.ne.s32.totalorder %s73, %s76
      %p85 = scmp.eq.s32.totalorder %s21, 1
      %p86 = por %p84, %p85
      %p87 = scmp.ne.s32.totalorder %s76, %s77
      %p88 = scmp.eq.s32.totalorder %s21, 0
      %p89 = por %p87, %p88
      %p90 = scmp.ne.s32.totalorder %s76, %s77
      %p91 = scmp.eq.s32.totalorder %s22, 1
      %p92 = por %p90, %p91
      %p94 = scmp.ne.s32.totalorder %s77, %s93
      %p95 = scmp.eq.s32.totalorder %s22, 0
      %p96 = por %p94, %p95
      %p97 = scmp.le.s32.totalorder 1, %s16
      %p98 = scmp.lt.s32.totalorder %s16, 3
      %p99 = pnand %p97, %p98
      %p100 = pneg %p99
      // Predicated region
      $region9: #{tpu_custom_call.1} parent=5 // pred_check
        _
      $region10: #{tpu_custom_call.1} parent=5 // pred_check_branch
        %102 = sbr.rel (%p99) target = $region12
      $region11: #{tpu_custom_call.1} parent=5 // pred_region
        %s103 = ssub.s32 %s16, 1
        // Predicated region
        $region13: #{tpu_custom_call.1} parent=11 // pred_check
          %p104 = pneg %p37
        $region14: #{tpu_custom_call.1} parent=11 // pred_check_branch
          %106 = sbr.rel (%p104) target = $region16
        $region15: #{tpu_custom_call.1} parent=11 // pred_region
          _
        $region16: #{tpu_custom_call.1} parent=11 // pred_fallthru
          _
      $region12: #{tpu_custom_call.1} parent=5 // pred_fallthru
        _
      %p107 = scmp.lt.s32.totalorder %s16, 2
      // Predicated region
      $region17: #{tpu_custom_call.1} parent=5 // pred_check
        %p108 = pneg %p107
      $region18: #{tpu_custom_call.1} parent=5 // pred_check_branch
        %110 = sbr.rel (%p108) target = $region20
      $region19: #{tpu_custom_call.1} parent=5 // pred_region
        // Predicated region
        $region21: #{tpu_custom_call.1} parent=19 // pred_check
          %p111 = pneg %p57
        $region22: #{tpu_custom_call.1} parent=19 // pred_check_branch
          %113 = sbr.rel (%p111) target = $region24
        $region23: #{tpu_custom_call.1} parent=19 // pred_region
          %s114 = sand.u32 %s47, 1
          %s115 = scalar_lea.sflag [#allocation4], %s114
          %s116 = sand.u32 %s47, 1
          %s117 = smul.addr %s116, 8
          %s118 = scalar_lea.vmem [#allocation3], %s117
          %s120 = ssub.s32 128, 128
          %121 = vsyncadd %s115, %s120
          %s122 = smul.addr %s16, 2
          %s123 = smul.addr %s122, 64
          %s124 = scalar_lea.hbm %s1, %s123
          %s126 = sshll.u32 %s118, 4
          %s127 = int_to_ptr.vmem [resolvable:$true] %s126
          %129 = dma.hbm_to_vmem [thread:$0]  %s124, 128, %s127, %s115
        $region24: #{tpu_custom_call.1} parent=19 // pred_fallthru
          _
      $region20: #{tpu_custom_call.1} parent=5 // pred_fallthru
        _
      %p130 = scmp.le.s32.totalorder 1, %s16
      %p131 = scmp.lt.s32.totalorder %s16, 3
      %p132 = pnand %p130, %p131
      %p133 = pneg %p132
      // Predicated region
      $region25: #{tpu_custom_call.1} parent=5 // pred_check
        _
      $region26: #{tpu_custom_call.1} parent=5 // pred_check_branch
        %135 = sbr.rel (%p132) target = $region28
      $region27: #{tpu_custom_call.1} parent=5 // pred_region
        %s136 = ssub.s32 %s16, 1
        %s137 = sand.u32 %s50, 1
        %s138 = scalar_lea.sflag [#allocation4], %s137
        %s139 = sand.u32 %s50, 1
        %s140 = smul.addr %s139, 8
        %s141 = scalar_lea.vmem [#allocation3], %s140
        // Predicated region
        $region29: #{tpu_custom_call.1} parent=27 // pred_check
          %p142 = pneg %p63
        $region30: #{tpu_custom_call.1} parent=27 // pred_check_branch
          %144 = sbr.rel (%p142) target = $region32
        $region31: #{tpu_custom_call.1} parent=27 // pred_region
          %145 = dma.done %s138, 128
        $region32: #{tpu_custom_call.1} parent=27 // pred_fallthru
          _
        %p146 = pneg %p37
        %p147 = pneg %p34
        %s148 = sand.u32 %s50, 1
        %s149 = scalar_lea.sflag [#allocation4], %s148
        %s150 = sand.u32 %s50, 1
        %s151 = smul.addr %s150, 8
        %s152 = scalar_lea.vmem [#allocation3], %s151
        %p153 = pneg %p63
        %p154 = pneg %p60
        %p155 = pneg %p89
        %p156 = pneg %p86
        %s157 = sand.u32 %s76, 1
        %s158 = scalar_lea.sflag [#allocation5], %s157
        %s159 = sand.u32 %s76, 1
        %s160 = smul.addr %s159, 8
        %s161 = scalar_lea.vmem [#allocation6], %s160
        %v162 = vld [vmem:[%s141] sm:$0xff]
        %v164 = vcombine.high %v162, %v162
        %166 = vmatprep.subr.mxu0 %v164
        %167 = vmatpush1.xpose.msra.mxu0 %v162
        %168 = vmatprep.subr.mxu0 0.0
        %169 = vmatpush1.xpose.msra.mxu0 0.0
        %170 = vmatprep.subr.mxu0 0.0
        %171 = vmatpush1.xpose.msra.mxu0 0.0
        %172 = vmatprep.subr.mxu0 0.0
        %173 = vmatpush1.xpose.msra.mxu0 0.0
        %174 = vmatprep.subr.mxu0 0.0
        %175 = vmatpush1.xpose.msra.mxu0 0.0
        %176 = vmatprep.subr.mxu0 0.0
        %177 = vmatpush1.xpose.msra.mxu0 0.0
        %178 = vmatprep.subr.mxu0 0.0
        %179 = vmatpush1.xpose.msra.mxu0 0.0
        %180 = vmatprep.subr.mxu0 0.0
        %181 = vmatpush1.xpose.msra.mxu0 0.0
        %182 = vmatprep.subr.mxu0 0.0
        %183 = vmatpush1.xpose.msra.mxu0 0.0
        %184 = vmatprep.subr.mxu0 0.0
        %185 = vmatpush1.xpose.msra.mxu0 0.0
        %186 = vmatprep.subr.mxu0 0.0
        %187 = vmatpush1.xpose.msra.mxu0 0.0
        %188 = vmatprep.subr.mxu0 0.0
        %189 = vmatpush1.xpose.msra.mxu0 0.0
        %190 = vmatprep.subr.mxu0 0.0
        %191 = vmatpush1.xpose.msra.mxu0 0.0
        %192 = vmatprep.subr.mxu0 0.0
        %193 = vmatpush1.xpose.msra.mxu0 0.0
        %194 = vmatprep.subr.mxu0 0.0
        %195 = vmatpush1.xpose.msra.mxu0 0.0
        %196 = vmatprep.subr.mxu0 0.0
        %197 = vmatpush1.xpose.msra.mxu0 0.0
        %198 = vmatprep.subr.mxu0 0.0
        %199 = vmatpush1.xpose.msra.mxu0 0.0
        %200 = vmatprep.subr.mxu0 0.0
        %201 = vmatpush1.xpose.msra.mxu0 0.0
        %202 = vmatprep.subr.mxu0 0.0
        %203 = vmatpush1.xpose.msra.mxu0 0.0
        %204 = vmatprep.subr.mxu0 0.0
        %205 = vmatpush1.xpose.msra.mxu0 0.0
        %206 = vmatprep.subr.mxu0 0.0
        %207 = vmatpush1.xpose.msra.mxu0 0.0
        %208 = vmatprep.subr.mxu0 0.0
        %209 = vmatpush1.xpose.msra.mxu0 0.0
        %210 = vmatprep.subr.mxu0 0.0
        %211 = vmatpush1.xpose.msra.mxu0 0.0
        %212 = vmatprep.subr.mxu0 0.0
        %213 = vmatpush1.xpose.msra.mxu0 0.0
        %214 = vmatprep.subr.mxu0 0.0
        %215 = vmatpush1.xpose.msra.mxu0 0.0
        %216 = vmatprep.subr.mxu0 0.0
        %217 = vmatpush1.xpose.msra.mxu0 0.0
        %218 = vmatprep.subr.mxu0 0.0
        %219 = vmatpush1.xpose.msra.mxu0 0.0
        %220 = vmatprep.subr.mxu0 0.0
        %221 = vmatpush1.xpose.msra.mxu0 0.0
        %222 = vmatprep.subr.mxu0 0.0
        %223 = vmatpush1.xpose.msra.mxu0 0.0
        %224 = vmatprep.subr.mxu0 0.0
        %225 = vmatpush1.xpose.msra.mxu0 0.0
        %226 = vmatprep.subr.mxu0 0.0
        %227 = vmatpush1.xpose.msra.mxu0 0.0
        %228 = vmatprep.subr.mxu0 0.0
        %229 = vmatpush1.xpose.msra.mxu0 0.0
        %230 = vmatprep.mubr.f32.mxu0 %v164
        %231 = vmatmul.mubr.f32.gmra.mrb[0].mxu0 %v162
        %v232 = vpop.f32.mrb[0].mxu0
        %v233 = vadd.f32 0.0, %v232
        %v234 = vpop.f32.mrb[0].mxu0
        %235 = vdwg.mxu0
        %vm236 = vcmask 27648
        %v237 = vsel %vm236, %v233, inf
        %238 = vmin.xlane.f32.xlu0 %v237
        %v239 = vpop.xlane.xlu0 %238
        %v240 = vsub.f32 %v239, %v233
        %v241 = vmul.f32 %v240, 1.442695
        %v242 = vpow.pop %v241
        %v243 = vsel %vm236, %v242, 0.0
        %244 = vadd.xlane.f32.xlu0 %v243
        %v245 = vpop.xlane.xlu0 %244
        %v246 = vrcp.pop %v245
        %v247 = vmul.f32 %v242, %v246
        %v248 = vld [vmem:[#allocation2] sm:$0x1]
        %vm249 = vcmask 31744
        %v251 = vsel %vm249, %v247, 0
        %vm253 = vcmask 1043456
        %v254 = vsel %vm253, %v162, 0
        %v256 = vsel %vm253, %v164, 0
        %258 = vmatprep.subr.mxu0 %v256
        %259 = vmatpush1.msra.mxu0 %v254
        %260 = vmatprep.subr.mxu0 0.0
        %261 = vmatpush1.msra.mxu0 0.0
        %262 = vmatprep.subr.mxu0 0.0
        %263 = vmatpush1.msra.mxu0 0.0
        %264 = vmatprep.subr.mxu0 0.0
        %265 = vmatpush1.msra.mxu0 0.0
        %266 = vmatprep.subr.mxu0 0.0
        %267 = vmatpush1.msra.mxu0 0.0
        %268 = vmatprep.subr.mxu0 0.0
        %269 = vmatpush1.msra.mxu0 0.0
        %270 = vmatprep.subr.mxu0 0.0
        %271 = vmatpush1.msra.mxu0 0.0
        %272 = vmatprep.subr.mxu0 0.0
        %273 = vmatpush1.msra.mxu0 0.0
        %274 = vmatprep.subr.mxu0 0.0
        %275 = vmatpush1.msra.mxu0 0.0
        %276 = vmatprep.subr.mxu0 0.0
        %277 = vmatpush1.msra.mxu0 0.0
        %278 = vmatprep.subr.mxu0 0.0
        %279 = vmatpush1.msra.mxu0 0.0
        %280 = vmatprep.subr.mxu0 0.0
        %281 = vmatpush1.msra.mxu0 0.0
        %282 = vmatprep.subr.mxu0 0.0
        %283 = vmatpush1.msra.mxu0 0.0
        %284 = vmatprep.subr.mxu0 0.0
        %285 = vmatpush1.msra.mxu0 0.0
        %286 = vmatprep.subr.mxu0 0.0
        %287 = vmatpush1.msra.mxu0 0.0
        %288 = vmatprep.subr.mxu0 0.0
        %289 = vmatpush1.msra.mxu0 0.0
        %290 = vmatprep.subr.mxu0 0.0
        %291 = vmatpush1.msra.mxu0 0.0
        %292 = vmatprep.subr.mxu0 0.0
        %293 = vmatpush1.msra.mxu0 0.0
        %294 = vmatprep.subr.mxu0 0.0
        %295 = vmatpush1.msra.mxu0 0.0
        %296 = vmatprep.subr.mxu0 0.0
        %297 = vmatpush1.msra.mxu0 0.0
        %298 = vmatprep.subr.mxu0 0.0
        %299 = vmatpush1.msra.mxu0 0.0
        %300 = vmatprep.subr.mxu0 0.0
        %301 = vmatpush1.msra.mxu0 0.0
        %302 = vmatprep.subr.mxu0 0.0
        %303 = vmatpush1.msra.mxu0 0.0
        %304 = vmatprep.subr.mxu0 0.0
        %305 = vmatpush1.msra.mxu0 0.0
        %306 = vmatprep.subr.mxu0 0.0
        %307 = vmatpush1.msra.mxu0 0.0
        %308 = vmatprep.subr.mxu0 0.0
        %309 = vmatpush1.msra.mxu0 0.0
        %310 = vmatprep.subr.mxu0 0.0
        %311 = vmatpush1.msra.mxu0 0.0
        %312 = vmatprep.subr.mxu0 0.0
        %313 = vmatpush1.msra.mxu0 0.0
        %314 = vmatprep.subr.mxu0 0.0
        %315 = vmatpush1.msra.mxu0 0.0
        %316 = vmatprep.subr.mxu0 0.0
        %317 = vmatpush1.msra.mxu0 0.0
        %318 = vmatprep.subr.mxu0 0.0
        %319 = vmatpush1.msra.mxu0 0.0
        %320 = vmatprep.subr.mxu0 0.0
        %321 = vmatpush1.msra.mxu0 0.0
        %322 = vmatprep.mubr.f32.mxu0 0.0
        %323 = vmatmul.mubr.f32.gmra.mrb[0].mxu0 %v251
        %v324 = vpop.f32.mrb[0].mxu0
        %v325 = vadd.f32 0.0, %v324
        %v326 = vpop.f32.mrb[0].mxu0
        %v327 = vadd.f32 0.0, %v326
        %328 = vdwg.mxu0
        %v330 = vlaneseq
        %v331 = vshrl.u32 %v330, 7
        %v332 = vsub.s32 0, %v331
        %v333 = vrot.slane %v248, %v332
        %334 = vset.pattern.permute.xlu0 0
        %335 = vperm.xlu0 %334, %v333
        %v336 = vpop.permute.xlu0 %335
        %v338 = vmul.f32 %v336, %v325
        %v339 = vmul.f32 %v336, %v327
        %v340 = vadd.f32 %v338, %v162
        %v341 = vadd.f32 %v339, %v164
        %v344 = vcombine.low %v340, %v341
        %346 = vst [vmem:[%s161] sm:$0xff] %v344
        %s347 = sand.u32 %s76, 1
        %s348 = scalar_lea.sflag [#allocation5], %s347
        %s349 = sand.u32 %s76, 1
        %s350 = smul.addr %s349, 8
        %s351 = scalar_lea.vmem [#allocation6], %s350
        // Predicated region
        $region33: #{tpu_custom_call.1} parent=27 // pred_check
          %p352 = pneg %p86
        $region34: #{tpu_custom_call.1} parent=27 // pred_check_branch
          %354 = sbr.rel (%p352) target = $region36
        $region35: #{tpu_custom_call.1} parent=27 // pred_region
          %s356 = ssub.s32 128, 128
          %357 = vsyncadd %s348, %s356
          %s358 = smul.addr %s21, 2
          %s359 = smul.addr %s358, 64
          %s360 = scalar_lea.hbm %s2, %s359
          %s362 = sshll.u32 %s351, 4
          %s363 = int_to_ptr.vmem [resolvable:$true] %s362
          %365 = dma.vmem_to_hbm [thread:$0]  %s363, 128, %s360, %s348
        $region36: #{tpu_custom_call.1} parent=27 // pred_fallthru
          _
      $region28: #{tpu_custom_call.1} parent=5 // pred_fallthru
        _
      %p366 = scmp.le.s32.totalorder 2, %s16
      // Predicated region
      $region37: #{tpu_custom_call.1} parent=5 // pred_check
        %p367 = pneg %p366
      $region38: #{tpu_custom_call.1} parent=5 // pred_check_branch
        %369 = sbr.rel (%p367) target = $region40
      $region39: #{tpu_custom_call.1} parent=5 // pred_region
        %s370 = ssub.s32 %s16, 2
        // Predicated region
        $region41: #{tpu_custom_call.1} parent=39 // pred_check
          %p371 = pneg %p92
        $region42: #{tpu_custom_call.1} parent=39 // pred_check_branch
          %373 = sbr.rel (%p371) target = $region44
        $region43: #{tpu_custom_call.1} parent=39 // pred_region
          %s374 = sand.u32 %s77, 1
          %s375 = scalar_lea.sflag [#allocation5], %s374
          %s376 = sand.u32 %s77, 1
          %s377 = smul.addr %s376, 8
          %s378 = scalar_lea.vmem [#allocation6], %s377
          %379 = dma.done %s375, 128
        $region44: #{tpu_custom_call.1} parent=39 // pred_fallthru
          _
      $region40: #{tpu_custom_call.1} parent=5 // pred_fallthru
        _
    $region6: #{tpu_custom_call.1} parent=1 // loop_footer
      %s20 = sadd.s32 1, %s16
    $region7: #{tpu_custom_call.1} parent=1 // loop_footer_branch
      %15 = sbr.rel target = $region3
    $region8: #{tpu_custom_call.1} parent=1 // loop_exit
      _
    %380 = vsyncpa [#allocation4], 1
    %s381 = scalar_lea.sflag [#allocation4], 1
    %382 = vsyncpa %s381, 1
    %383 = vsyncpa [#allocation5], 1
    %s384 = scalar_lea.sflag [#allocation5], 1
    %385 = vsyncpa %s384, 1

</llo_original>
